<compile_context>
chip_gen: v6e
topology: v6e:2x2x1
jax: 0.10.0
libtpu: 0.0.40
codegen_flags: <defaults>
</compile_context>

<pallas_src>
import functools

import jax
import jax.numpy as jnp
from jax import lax
from jax.experimental import pallas as pl
from jax.experimental.pallas import tpu as pltpu


# ----------------------------- kernel body ----------------------------------


def _rmsnorm_kernel(x_ref, w_ref, o_ref, *, eps, inv_h, input_dtype):
    # HBM-bound streaming op: one reduction over the lane axis + elementwise
    # scale.  rsqrt goes to the EUP (free slot); everything else is VPU.
    x = x_ref[...].astype(jnp.float32)                 # (tm, H) f32
    ssq = jnp.sum(x * x, axis=-1, keepdims=True)       # (tm, 1)
    scale = lax.rsqrt(ssq * inv_h + eps)               # mean folded into rsqrt
    x_norm = (x * scale).astype(input_dtype)           # back to input dtype
    # weight stays in its own dtype (HF: self.weight * x.to(input_dtype));
    # product dtype == o_ref.dtype == result_type(weight, input).
    o_ref[...] = w_ref[...] * x_norm


# --------------------------- tiling heuristics -------------------------------

_TARGET_ROW_TILE = 1024  # past the ~512-row knee where HBM roofline flattens


def _vmem_budgets():
    """Generation-aware (block_budget, scoped_limit) in bytes."""
    cap = None
    try:
        cap = getattr(pltpu.get_tpu_info(), "vmem_capacity_bytes", None)
    except Exception:
        cap = None
    if not cap:
        cap = 64 * 1024 * 1024  # conservative fallback (v7x per-TC VMEM)
    block_budget = int(cap * 0.375)  # ~24 MiB on v7x, ~48 MiB on v5e/v6e
    scoped_limit = int(cap * 0.5)    # ~32 MiB on v7x, ~64 MiB on v5e/v6e
    return block_budget, scoped_limit


def _round_up(a, b):
    return ((a + b - 1) // b) * b


def _sublane_multiple(dtype):
    # 4-byte -> 8 rows/vreg, 2-byte -> 16, 1-byte -> 32 (sublane packing).
    return max(8, 32 // jnp.dtype(dtype).itemsize)


def _choose_row_tile(rows, hidden, in_dtype, out_dtype, block_budget):
    in_bytes = jnp.dtype(in_dtype).itemsize
    out_bytes = jnp.dtype(out_dtype).itemsize
    mult = max(_sublane_multiple(in_dtype), _sublane_multiple(out_dtype))

    # Per-row VMEM footprint of one grid step:
    #   2 * in   (double-buffered input)
    # + 2 * out  (double-buffered output)
    # + ~8 B     (materialized f32 upcast + normalized temporaries)
    per_row = hidden * (2 * in_bytes + 2 * out_bytes + 8)
    cap = max(mult, (block_budget // per_row) // mult * mult)
    tm = min(_TARGET_ROW_TILE, cap)

    if rows <= tm:
        # Single block equal to the full rows dim (always a legal block shape).
        return rows

    steps = pl.cdiv(rows, tm)
    # Prefer an even step count so v7x's two TensorCores get equal work.
    if steps % 2 == 1:
        steps += 1
    tm = min(cap, _round_up(pl.cdiv(rows, steps), mult))
    return max(tm, mult)


# ------------------------------- wrapper -------------------------------------


def llama_rms_norm(hidden_states, weight, eps=1e-6):
    """Pallas RMSNorm. hidden_states: (..., H); weight: (H,)."""
    orig_shape = hidden_states.shape
    in_dtype = hidden_states.dtype
    H = orig_shape[-1]
    # Strict HF semantics: weight (own dtype) * x_norm (input dtype).
    out_dtype = jnp.result_type(in_dtype, weight.dtype)

    x2d = hidden_states.reshape(-1, H)
    rows = x2d.shape[0]
    w2d = weight.reshape(1, H)

    block_budget, vmem_limit = _vmem_budgets()
    tm = _choose_row_tile(rows, H, in_dtype, out_dtype, block_budget)
    grid = (pl.cdiv(rows, tm),)  # edge block (if any) is masked by Pallas

    in_bytes = jnp.dtype(in_dtype).itemsize
    out_bytes = jnp.dtype(out_dtype).itemsize
    cost = pl.CostEstimate(
        flops=4 * rows * H,
        transcendentals=rows,
        bytes_accessed=rows * H * (in_bytes + out_bytes)
        + H * jnp.dtype(weight.dtype).itemsize,
    )

    out = pl.pallas_call(
        functools.partial(
            _rmsnorm_kernel, eps=eps, inv_h=1.0 / H, input_dtype=in_dtype
        ),
        out_shape=jax.ShapeDtypeStruct((rows, H), out_dtype),
        grid_spec=pltpu.PrefetchScalarGridSpec(
            num_scalar_prefetch=0,
            grid=grid,
            in_specs=[
                pl.BlockSpec((tm, H), lambda i: (i, 0)),   # x rows tile (lane-dense)
                pl.BlockSpec((1, H), lambda i: (0, 0)),    # weight, replicated
            ],
            out_specs=pl.BlockSpec((tm, H), lambda i: (i, 0)),
        ),
        compiler_params=pltpu.CompilerParams(
            dimension_semantics=("parallel",),
            vmem_limit_bytes=vmem_limit,
        ),
        cost_estimate=cost,
    )(x2d, w2d)

    return out.reshape(orig_shape[:-1] + (H,))


# ------------------------------ reference ------------------------------------


def _reference_rmsnorm(hidden_states, weight, eps=1e-6):
    in_dtype = hidden_states.dtype
    x = hidden_states.astype(jnp.float32)
    var = jnp.mean(x * x, axis=-1, keepdims=True)
    x = x * lax.rsqrt(var + eps)
    return weight * x.astype(in_dtype)


if __name__ == "__main__":
    key = jax.random.PRNGKey(0)

    # Case 1: small f32 shapes (batch=2, seq=8, hidden=128).
    x = jax.random.normal(key, (2, 8, 128), dtype=jnp.float32)
    weight = jnp.ones((128,), dtype=jnp.float32)  # nn.Parameter(torch.ones(H))
    out = jax.block_until_ready(llama_rms_norm(x, weight, eps=1e-6))
    ref = _reference_rmsnorm(x, weight, eps=1e-6)
    assert out.shape == x.shape and out.dtype == ref.dtype
    assert jnp.allclose(out, ref, atol=1e-5, rtol=1e-5), "mismatch (case 1)"

    # Case 2: row count not a multiple of the tile -> masked edge block path.
    x2 = jax.random.normal(jax.random.PRNGKey(1), (3, 7, 256), dtype=jnp.float32)
    w2 = jnp.ones((256,), dtype=jnp.float32)
    out2 = jax.block_until_ready(llama_rms_norm(x2, w2, eps=1e-6))
    ref2 = _reference_rmsnorm(x2, w2, eps=1e-6)
    assert out2.shape == x2.shape and out2.dtype == ref2.dtype
    assert jnp.allclose(out2, ref2, atol=1e-5, rtol=1e-5), "mismatch (case 2)"

    # Case 3: bf16 activations with f32 weight (HF promotion -> f32 output).
    x3 = jax.random.normal(jax.random.PRNGKey(2), (4, 24, 512)).astype(jnp.bfloat16)
    w3 = jnp.ones((512,), dtype=jnp.float32)
    out3 = jax.block_until_ready(llama_rms_norm(x3, w3, eps=1e-6))
    ref3 = _reference_rmsnorm(x3, w3, eps=1e-6)
    assert out3.shape == x3.shape and out3.dtype == ref3.dtype
    assert jnp.allclose(out3, ref3, atol=2e-2, rtol=2e-2), "mismatch (case 3)"

    print("KERNEL_OK")
</pallas_src>

<mosaic_0001>
module attributes {stable_mosaic.version = 11 : i64} {
  func.func @_rmsnorm_kernel(%arg0: i32, %arg1: memref<16x128xf32, #tpu.memory_space<vmem>>, %arg2: memref<1x128xf32, #tpu.memory_space<vmem>>, %arg3: memref<16x128xf32, #tpu.memory_space<vmem>>) attributes {dimension_semantics = [#tpu.dimension_semantics<parallel>], iteration_bounds = array<i64: 1>, scalar_prefetch = 0 : i64, scratch_operands = 0 : i64, tpu.core_type = #tpu.core_type<tc>, window_params = [{transform_indices = @transform_0, window_bounds = array<i64: 16, 128>}, {pipeline_mode = #tpu.pipeline_mode<synchronous>, transform_indices = @transform_1, window_bounds = array<i64: 1, 128>}, {transform_indices = @transform_2, window_bounds = array<i64: 16, 128>}]} {
    %c0 = arith.constant 0 : index
    %c0_0 = arith.constant 0 : index
    %0 = vector.load %arg1[%c0, %c0_0] : memref<16x128xf32, #tpu.memory_space<vmem>>, vector<16x128xf32>
    %1 = arith.mulf %0, %0 : vector<16x128xf32>
    %cst = arith.constant dense<0.000000e+00> : vector<16xf32>
    %2 = vector.multi_reduction <add>, %1, %cst [1] : vector<16x128xf32> to vector<16xf32>
    %3 = vector.shape_cast %2 : vector<16xf32> to vector<16x1xf32>
    %cst_1 = arith.constant 7.812500e-03 : f32
    %4 = vector.broadcast %cst_1 : f32 to vector<16x1xf32>
    %5 = arith.mulf %3, %4 : vector<16x1xf32>
    %cst_2 = arith.constant 9.99999997E-7 : f32
    %6 = vector.broadcast %cst_2 : f32 to vector<16x1xf32>
    %7 = arith.addf %5, %6 : vector<16x1xf32>
    %8 = math.rsqrt %7 : vector<16x1xf32>
    %9 = vector.broadcast %8 : vector<16x1xf32> to vector<16x128xf32>
    %10 = arith.mulf %0, %9 : vector<16x128xf32>
    %c0_3 = arith.constant 0 : index
    %c0_4 = arith.constant 0 : index
    %11 = vector.load %arg2[%c0_3, %c0_4] : memref<1x128xf32, #tpu.memory_space<vmem>>, vector<1x128xf32>
    %12 = vector.broadcast %11 : vector<1x128xf32> to vector<16x128xf32>
    %13 = arith.mulf %12, %10 : vector<16x128xf32>
    %c0_5 = arith.constant 0 : index
    %c0_6 = arith.constant 0 : index
    %14 = vector.load %arg3[%c0_5, %c0_6] : memref<16x128xf32, #tpu.memory_space<vmem>>, vector<16x128xf32>
    tpu.vector_store %arg3[%c0_5, %c0_6], %13 {strides = array<i32>} : memref<16x128xf32, #tpu.memory_space<vmem>>, vector<16x128xf32>,
    return
  }
  func.func @transform_0(%arg0: i32) -> (i32, i32) {
    %c0_i32 = arith.constant 0 : i32
    %c0_i32_0 = arith.constant 0 : i32
    return %arg0, %c0_i32 : i32, i32
  }
  func.func @transform_1(%arg0: i32) -> (i32, i32) {
    %c0_i32 = arith.constant 0 : i32
    %c0_i32_0 = arith.constant 0 : i32
    %c0_i32_1 = arith.constant 0 : i32
    return %c0_i32, %c0_i32_0 : i32, i32
  }
  func.func @transform_2(%arg0: i32) -> (i32, i32) {
    %c0_i32 = arith.constant 0 : i32
    %c0_i32_0 = arith.constant 0 : i32
    return %arg0, %c0_i32 : i32, i32
  }
}

</mosaic_0001>

<llo_original>
// kernel: tpu_custom_call.1
$region0: #{tpu_custom_call.1}
  #allocation0 [shape = 'u32[]', space=smem, size = 0x4, offset = 0x4, fixed_abs, tag = 'smem constant byte address 0x4 - core index']
  #allocation1 [shape = 'u32[144,128]{1,0:T(1,128)}', space=vmem, size = 0x12000, scoped, tag = 'internal scratch']
  %s0 = inlined_call_operand.hbm [shape: f32[16,128], index: 0, kind: input, shape index: {}]
  %s1 = inlined_call_operand.vmem [shape: f32[1,128], index: 1, kind: input, shape index: {}]
  %s2 = inlined_call_operand.hbm [shape: f32[16,128], index: 2, kind: output, shape index: {}]
  %s3 = sld [smem:[#allocation0]]
  $region22: #{tpu_custom_call.1} parent=0
    _
  %s5 = ssub.s32 1, %s3
  %s6 = scalar_select 0, %s5, %s3
  $region1: #{tpu_custom_call.1} parent=0
    #allocation2 [shape = 'u8[8192]{0}', space=vmem, size = 0x2000, scoped, tag = 'input window, operand 0, single buffered']
    #allocation3 [shape = 's32[1]{0}', space=sflag, size = 0x4, scoped, tag = 'scoped memory for tpu_custom_call.1']
    #allocation4 [shape = 's32[1]{0}', space=sflag, size = 0x4, scoped, tag = 'scoped memory for tpu_custom_call.1']
    #allocation5 [shape = 'u8[8192]{0}', space=vmem, size = 0x2000, scoped, tag = 'output window, operand 0, single buffered']
    %7 = vsyncpa [#allocation3], 0
    %8 = vsyncpa [#allocation4], 0
    // Predicated region
    $region2: #{tpu_custom_call.1} parent=1 // pred_check
      _
    $region3: #{tpu_custom_call.1} parent=1 // pred_check_branch
      %10 = sbr.rel (0) target = $region5
    $region4: #{tpu_custom_call.1} parent=1 // pred_region
      %s12 = ssub.s32 256, 256
      %13 = vsyncadd [#allocation3], %s12
      %s14 = sshll.u32 [#allocation2], 4
      %s15 = int_to_ptr.vmem [resolvable:$true] %s14
      %20 = dma.hbm_to_vmem [thread:$0]  %s0, 256, %s15, [#allocation3], 128, 128, 8
    $region5: #{tpu_custom_call.1} parent=1 // pred_fallthru
      _
    // Predicated region
    $region6: #{tpu_custom_call.1} parent=1 // pred_check
      _
    $region7: #{tpu_custom_call.1} parent=1 // pred_check_branch
      %22 = sbr.rel (0) target = $region9
    $region8: #{tpu_custom_call.1} parent=1 // pred_region
      _
    $region9: #{tpu_custom_call.1} parent=1 // pred_fallthru
      _
    // Predicated region
    $region10: #{tpu_custom_call.1} parent=1 // pred_check
      _
    $region11: #{tpu_custom_call.1} parent=1 // pred_check_branch
      %24 = sbr.rel (0) target = $region13
    $region12: #{tpu_custom_call.1} parent=1 // pred_region
      %25 = dma.done [#allocation3], 256
    $region13: #{tpu_custom_call.1} parent=1 // pred_fallthru
      _
    %v26 = vld [vmem:[#allocation2] sm:$0xff]
    %v27 = vld [vmem:[#allocation2 + $0x8] sm:$0xff]
    %v28 = vmul.f32 %v26, %v26
    %v29 = vmul.f32 %v27, %v27
    %30 = vadd.xlane.f32.xlu0 %v28
    %v31 = vpop.xlane.xlu0 %30
    %32 = vadd.xlane.f32.xlu0 %v29
    %v33 = vpop.xlane.xlu0 %32
    %v34 = vmul.f32 %v31, 0.0078125
    %v35 = vmul.f32 %v33, 0.0078125
    %v36 = vadd.f32 %v34, 1e-06
    %v37 = vadd.f32 %v35, 1e-06
    %v38 = vrsqrt.pop %v36
    %v39 = vrsqrt.pop %v37
    %v40 = vmul.f32 %v26, %v38
    %v41 = vmul.f32 %v27, %v39
    %v42 = vld [vmem:[%s1] sm:$0x1]
    %v44 = vlaneseq
    %v45 = vshrl.u32 %v44, 7
    %v46 = vsub.s32 0, %v45
    %v47 = vrot.slane %v42, %v46
    %v49 = vmul.f32 %v47, %v40
    %v50 = vmul.f32 %v47, %v41
    %51 = vst [vmem:[#allocation5] sm:$0xff] %v49
    %52 = vst [vmem:[#allocation5 + $0x8] sm:$0xff] %v50
    // Predicated region
    $region14: #{tpu_custom_call.1} parent=1 // pred_check
      _
    $region15: #{tpu_custom_call.1} parent=1 // pred_check_branch
      %54 = sbr.rel (0) target = $region17
    $region16: #{tpu_custom_call.1} parent=1 // pred_region
      %s56 = ssub.s32 256, 256
      %57 = vsyncadd [#allocation4], %s56
      %s58 = sshll.u32 [#allocation5], 4
      %s59 = int_to_ptr.vmem [resolvable:$true] %s58
      %64 = dma.vmem_to_hbm [thread:$0]  %s59, 256, %s2, [#allocation4], 128, 128, 8
    $region17: #{tpu_custom_call.1} parent=1 // pred_fallthru
      _
    // Predicated region
    $region18: #{tpu_custom_call.1} parent=1 // pred_check
      _
    $region19: #{tpu_custom_call.1} parent=1 // pred_check_branch
      %66 = sbr.rel (0) target = $region21
    $region20: #{tpu_custom_call.1} parent=1 // pred_region
      %67 = dma.done [#allocation4], 256
    $region21: #{tpu_custom_call.1} parent=1 // pred_fallthru
      _
    %68 = vsyncpa [#allocation3], 1
    %69 = vsyncpa [#allocation4], 1

</llo_original>
